<compile_context>
chip_gen: v7x
topology: tpu7x:2x2x1
jax: 0.10.0
libtpu: 0.0.40
codegen_flags: <defaults>
</compile_context>

<pallas_src>
import functools

import jax
import jax.numpy as jnp
from jax.experimental import pallas as pl
from jax.experimental.pallas import tpu as pltpu

_LANE = 128      # TPU lane width (last vreg dim)
_SUBLANE = 8     # TPU sublane width (second-to-last vreg dim, f32)


def _round_up(x, m):
    return (x + m - 1) // m * m


# ----------------------------------------------------------------------------
# Kernel
# ----------------------------------------------------------------------------
def _mlp_actor_kernel(x_ref, w_ref, b_ref, o_ref, *, layer_rows, act_limit,
                      act_dim):
    """One batch tile of the fused MLP actor.

    x_ref : [TB, IN0]        streamed obs tile (native dtype)
    w_ref : [sum_rows, W]    packed/padded f32 weights (VMEM-resident)
    b_ref : [L, W]           packed/padded f32 biases  (VMEM-resident)
    o_ref : [TB, act_dim]    narrow output tile (native dtype)

    layer_rows[j] = (row_offset, contract_rows) -- static per-layer slab
    offsets, so every slice below is a zero-cost static slice.
    """
    num_layers = len(layer_rows)
    h = x_ref[...].astype(jnp.float32)          # single cast, in-kernel
    for j, (off, rows) in enumerate(layer_rows):
        w = w_ref[pl.ds(off, rows), :]          # [rows, W]
        b = b_ref[pl.ds(j, 1), :]               # [1, W]
        h = jnp.dot(h, w, preferred_element_type=jnp.float32) + b
        if j < num_layers - 1:
            h = jnp.maximum(h, 0.0)             # hidden activation (ReLU)
        else:
            h = jnp.tanh(h)                     # output activation (Tanh)
    # Narrow store: only the act_dim valid lanes are written back to HBM.
    o_ref[...] = (act_limit * h[:, :act_dim]).astype(o_ref.dtype)


# ----------------------------------------------------------------------------
# Host-side packing (call ONCE at init) + forward wrapper
# ----------------------------------------------------------------------------
def pack_mlp_actor_params(weights, biases):
    """Pack per-layer params into two padded f32 slabs.

    weights[j]: [in_j, out_j]  (already transposed from PyTorch's [out, in])
    biases[j]:  [out_j] or [1, out_j]

    All layer output widths are padded to a common W = max_j round_up(out_j,
    128) (so widths like 256 are supported via multiple lane blocks); padded
    rows/cols are zeros, which is numerically inert (ReLU(0)=0, zero weight
    rows, final slice to act_dim).

    Returns (w_slab [sum_rows, W], b_slab [L, W], layer_rows, act_dim).
    """
    W = max(_round_up(int(w.shape[1]), _LANE) for w in weights)
    w_blocks, b_rows, layer_rows = [], [], []
    off = 0
    for j, (w, b) in enumerate(zip(weights, biases)):
        in_j, out_j = int(w.shape[0]), int(w.shape[1])
        if j > 0:
            assert in_j == int(weights[j - 1].shape[1])
        # Layer 0 keeps a sublane-rounded row count (narrow obs contraction);
        # every later layer consumes the full W-lane padded hidden state.
        rows_pad = _round_up(in_j, _SUBLANE) if j == 0 else W
        wp = jnp.zeros((rows_pad, W), jnp.float32)
        wp = wp.at[:in_j, :out_j].set(jnp.asarray(w, jnp.float32))
        bp = jnp.zeros((1, W), jnp.float32)
        bp = bp.at[:, :out_j].set(jnp.reshape(jnp.asarray(b, jnp.float32), (1, -1)))
        w_blocks.append(wp)
        b_rows.append(bp)
        layer_rows.append((off, in_j if j == 0 else W))
        off += rows_pad
    act_dim = int(weights[-1].shape[1])
    return (jnp.concatenate(w_blocks, axis=0),
            jnp.concatenate(b_rows, axis=0),
            tuple(layer_rows),
            act_dim)


def mlp_actor_forward(obs, w_slab, b_slab, *, layer_rows, act_dim, act_limit,
                      batch_tile=2048):
    """obs: [batch, obs_dim + goal_dim]; slabs from pack_mlp_actor_params."""
    batch, in_dim = obs.shape
    assert in_dim == layer_rows[0][1], "obs feature dim mismatch with packing"

    # Batch tile: large (2048 default) to amortize the ~0.35 us/step pipeline
    # overhead, but capped so the grid keeps >=2 steps whenever the batch
    # allows it (megacore sharding on v7x).  Always a multiple of 8.
    # Double-buffered tiles stay well under v7x's 32 MiB scoped-VMEM default.
    half = _round_up(pl.cdiv(batch, 2), _SUBLANE)
    tb = max(_SUBLANE, min(int(batch_tile), half))
    grid = (pl.cdiv(batch, tb),)

    W = int(w_slab.shape[1])
    padded_rows = grid[0] * tb
    flops = 2 * padded_rows * sum(rows * W for _, rows in layer_rows)
    bytes_accessed = (obs.size * obs.dtype.itemsize
                      + w_slab.size * w_slab.dtype.itemsize
                      + b_slab.size * b_slab.dtype.itemsize
                      + batch * act_dim * obs.dtype.itemsize)
    cost = pl.CostEstimate(flops=int(flops),
                           transcendentals=int(padded_rows * W),
                           bytes_accessed=int(bytes_accessed))

    kernel = functools.partial(_mlp_actor_kernel,
                               layer_rows=layer_rows,
                               act_limit=float(act_limit),
                               act_dim=act_dim)

    return pl.pallas_call(
        kernel,
        out_shape=jax.ShapeDtypeStruct((batch, act_dim), obs.dtype),
        grid=grid,
        in_specs=[
            pl.BlockSpec((tb, in_dim), lambda i: (i, 0)),      # streamed obs tile
            pl.BlockSpec(w_slab.shape, lambda i: (0, 0)),      # VMEM-resident weights
            pl.BlockSpec(b_slab.shape, lambda i: (0, 0)),      # VMEM-resident biases
        ],
        out_specs=pl.BlockSpec((tb, act_dim), lambda i: (i, 0)),  # narrow writeback
        compiler_params=pltpu.CompilerParams(
            dimension_semantics=("parallel",)),
        cost_estimate=cost,
    )(obs, w_slab, b_slab)


# ----------------------------------------------------------------------------
# Init + reference
# ----------------------------------------------------------------------------
def init_mlp_actor_params(key, sizes):
    """PyTorch-Linear-style init: U(-1/sqrt(fan_in), 1/sqrt(fan_in)).

    Returns weights transposed to [in, out] and biases as [1, out].
    """
    weights, biases = [], []
    for j in range(len(sizes) - 1):
        fan_in, fan_out = sizes[j], sizes[j + 1]
        key, kw, kb = jax.random.split(key, 3)
        bound = 1.0 / jnp.sqrt(jnp.float32(fan_in))
        w = jax.random.uniform(kw, (fan_in, fan_out), jnp.float32, -bound, bound)
        b = jax.random.uniform(kb, (1, fan_out), jnp.float32, -bound, bound)
        weights.append(w)
        biases.append(b)
    return weights, biases


def reference_forward(obs, weights, biases, act_limit):
    """Pure-JAX reference matching the PyTorch semantics."""
    h = obs
    n = len(weights)
    for j, (w, b) in enumerate(zip(weights, biases)):
        h = h @ w + b
        h = jnp.maximum(h, 0.0) if j < n - 1 else jnp.tanh(h)
    return act_limit * h


if __name__ == "__main__":
    # Small shapes consistent with the module's forward.
    batch = 2
    obs_dim, goal_dim = 12, 4          # obs input = [batch, obs_dim + goal_dim]
    act_dim = 8
    hidden_sizes = (32, 32)
    act_limit = 2.0

    sizes = [obs_dim + goal_dim] + list(hidden_sizes) + [act_dim]

    key = jax.random.PRNGKey(0)
    key, k_obs = jax.random.split(key)
    obs = jax.random.normal(k_obs, (batch, obs_dim + goal_dim), jnp.float32)
    weights, biases = init_mlp_actor_params(key, sizes)

    # Pack parameters ONCE (hoisted out of the per-step forward path).
    w_slab, b_slab, layer_rows, packed_act_dim = pack_mlp_actor_params(
        weights, biases)

    forward = jax.jit(functools.partial(
        mlp_actor_forward,
        layer_rows=layer_rows, act_dim=packed_act_dim, act_limit=act_limit))

    out = jax.block_until_ready(forward(obs, w_slab, b_slab))
    ref = reference_forward(obs, weights, biases, act_limit)
    assert out.shape == (batch, act_dim)
    assert jnp.allclose(out, ref, atol=1e-5, rtol=1e-5), "mismatch vs reference"

    # Larger, non-tile-multiple batch: exercises >=2 grid steps (megacore
    # path) and the ragged last block (padded reads, clipped writes).
    key, k_big = jax.random.split(key)
    big_obs = jax.random.normal(k_big, (1000, obs_dim + goal_dim), jnp.float32)
    big_out = jax.block_until_ready(forward(big_obs, w_slab, b_slab))
    big_ref = reference_forward(big_obs, weights, biases, act_limit)
    assert big_out.shape == (1000, act_dim)
    assert jnp.allclose(big_out, big_ref, atol=1e-5, rtol=1e-5), "big-batch mismatch"

    print("KERNEL_OK")
</pallas_src>

<mosaic_0001>
module attributes {stable_mosaic.version = 11 : i64} {
  func.func @_mlp_actor_kernel(%arg0: i32, %arg1: memref<8x16xf32, #tpu.memory_space<vmem>>, %arg2: memref<272x128xf32, #tpu.memory_space<vmem>>, %arg3: memref<3x128xf32, #tpu.memory_space<vmem>>, %arg4: memref<8x8xf32, #tpu.memory_space<vmem>>) attributes {dimension_semantics = [#tpu.dimension_semantics<parallel>], iteration_bounds = array<i64: 1>, scalar_prefetch = 0 : i64, scratch_operands = 0 : i64, tpu.core_type = #tpu.core_type<tc>, window_params = [{transform_indices = @transform_0, window_bounds = array<i64: 8, 16>}, {pipeline_mode = #tpu.pipeline_mode<synchronous>, transform_indices = @transform_1, window_bounds = array<i64: 272, 128>}, {pipeline_mode = #tpu.pipeline_mode<synchronous>, transform_indices = @transform_2, window_bounds = array<i64: 3, 128>}, {transform_indices = @transform_3, window_bounds = array<i64: 8, 8>}]} {
    %c0 = arith.constant 0 : index
    %c0_0 = arith.constant 0 : index
    %0 = vector.load %arg1[%c0, %c0_0] : memref<8x16xf32, #tpu.memory_space<vmem>>, vector<8x16xf32>
    %c0_1 = arith.constant 0 : index
    %c0_2 = arith.constant 0 : index
    %1 = vector.load %arg2[%c0_1, %c0_2] : memref<272x128xf32, #tpu.memory_space<vmem>>, vector<16x128xf32>
    %c0_3 = arith.constant 0 : index
    %c0_4 = arith.constant 0 : index
    %2 = vector.load %arg3[%c0_3, %c0_4] : memref<3x128xf32, #tpu.memory_space<vmem>>, vector<1x128xf32>
    %cst = arith.constant dense<0.000000e+00> : vector<8x128xf32>
    %3 = tpu.matmul %0, %1, %cst {dimension_numbers = #tpu.dot_dimension_numbers<[1], [0], [0], [1], [0, 0, 1, 1], [], []>} : vector<8x16xf32>, vector<16x128xf32>, vector<8x128xf32> -> vector<8x128xf32>
    %4 = vector.broadcast %2 : vector<1x128xf32> to vector<8x128xf32>
    %5 = arith.addf %3, %4 : vector<8x128xf32>
    %cst_5 = arith.constant 0.000000e+00 : f32
    %6 = vector.broadcast %cst_5 : f32 to vector<8x128xf32>
    %7 = arith.maximumf %5, %6 : vector<8x128xf32>
    %c16 = arith.constant 16 : index
    %c0_6 = arith.constant 0 : index
    %8 = vector.load %arg2[%c16, %c0_6] : memref<272x128xf32, #tpu.memory_space<vmem>>, vector<128x128xf32>
    %c1 = arith.constant 1 : index
    %c0_7 = arith.constant 0 : index
    %9 = vector.load %arg3[%c1, %c0_7] : memref<3x128xf32, #tpu.memory_space<vmem>>, vector<1x128xf32>
    %cst_8 = arith.constant dense<0.000000e+00> : vector<8x128xf32>
    %10 = tpu.matmul %7, %8, %cst_8 {dimension_numbers = #tpu.dot_dimension_numbers<[1], [0], [0], [1], [0, 0, 1, 1], [], []>} : vector<8x128xf32>, vector<128x128xf32>, vector<8x128xf32> -> vector<8x128xf32>
    %11 = vector.broadcast %9 : vector<1x128xf32> to vector<8x128xf32>
    %12 = arith.addf %10, %11 : vector<8x128xf32>
    %cst_9 = arith.constant 0.000000e+00 : f32
    %13 = vector.broadcast %cst_9 : f32 to vector<8x128xf32>
    %14 = arith.maximumf %12, %13 : vector<8x128xf32>
    %c144 = arith.constant 144 : index
    %c0_10 = arith.constant 0 : index
    %15 = vector.load %arg2[%c144, %c0_10] : memref<272x128xf32, #tpu.memory_space<vmem>>, vector<128x128xf32>
    %c2 = arith.constant 2 : index
    %c0_11 = arith.constant 0 : index
    %16 = vector.load %arg3[%c2, %c0_11] : memref<3x128xf32, #tpu.memory_space<vmem>>, vector<1x128xf32>
    %cst_12 = arith.constant dense<0.000000e+00> : vector<8x128xf32>
    %17 = tpu.matmul %14, %15, %cst_12 {dimension_numbers = #tpu.dot_dimension_numbers<[1], [0], [0], [1], [0, 0, 1, 1], [], []>} : vector<8x128xf32>, vector<128x128xf32>, vector<8x128xf32> -> vector<8x128xf32>
    %18 = vector.broadcast %16 : vector<1x128xf32> to vector<8x128xf32>
    %19 = arith.addf %17, %18 : vector<8x128xf32>
    %20 = math.tanh %19 : vector<8x128xf32>
    %21 = vector.extract_strided_slice %20 {offsets = [0, 0], sizes = [8, 8], strides = [1, 1]} : vector<8x128xf32> to vector<8x8xf32>
    %cst_13 = arith.constant 2.000000e+00 : f32
    %22 = vector.broadcast %cst_13 : f32 to vector<8x8xf32>
    %23 = arith.mulf %22, %21 : vector<8x8xf32>
    %c0_14 = arith.constant 0 : index
    %c0_15 = arith.constant 0 : index
    %24 = vector.load %arg4[%c0_14, %c0_15] : memref<8x8xf32, #tpu.memory_space<vmem>>, vector<8x8xf32>
    tpu.vector_store %arg4[%c0_14, %c0_15], %23 {strides = array<i32>} : memref<8x8xf32, #tpu.memory_space<vmem>>, vector<8x8xf32>,
    return
  }
  func.func @transform_0(%arg0: i32) -> (i32, i32) {
    %c0_i32 = arith.constant 0 : i32
    %c0_i32_0 = arith.constant 0 : i32
    return %arg0, %c0_i32 : i32, i32
  }
  func.func @transform_1(%arg0: i32) -> (i32, i32) {
    %c0_i32 = arith.constant 0 : i32
    %c0_i32_0 = arith.constant 0 : i32
    %c0_i32_1 = arith.constant 0 : i32
    return %c0_i32, %c0_i32_0 : i32, i32
  }
  func.func @transform_2(%arg0: i32) -> (i32, i32) {
    %c0_i32 = arith.constant 0 : i32
    %c0_i32_0 = arith.constant 0 : i32
    %c0_i32_1 = arith.constant 0 : i32
    return %c0_i32, %c0_i32_0 : i32, i32
  }
  func.func @transform_3(%arg0: i32) -> (i32, i32) {
    %c0_i32 = arith.constant 0 : i32
    %c0_i32_0 = arith.constant 0 : i32
    return %arg0, %c0_i32 : i32, i32
  }
}

</mosaic_0001>

<llo_original>
// kernel: mlp_actor_forward.1
$region0: #{mlp_actor_forward.1}
  #allocation0 [shape = 'u32[]', space=smem, size = 0x4, offset = 0x4, fixed_abs, tag = 'smem constant byte address 0x4 - core index']
  #allocation1 [shape = 'u32[144,128]{1,0:T(1,128)}', space=vmem, size = 0x12000, scoped, tag = 'internal scratch']
  %s0 = inlined_call_operand.hbm [shape: f32[2,16], index: 0, kind: input, shape index: {}]
  %s1 = inlined_call_operand.hbm [shape: f32[272,128], index: 1, kind: input, shape index: {}]
  %s2 = inlined_call_operand.vmem [shape: f32[3,128], index: 2, kind: input, shape index: {}]
  %s3 = inlined_call_operand.hbm [shape: f32[2,8], index: 3, kind: output, shape index: {}]
  %s4 = sld [smem:[#allocation0]]
  $region30: #{mlp_actor_forward.1} parent=0
    _
  %s6 = ssub.s32 1, %s4
  %s7 = scalar_select 0, %s6, %s4
  $region1: #{mlp_actor_forward.1} parent=0
    #allocation2 [shape = 'u8[4096]{0}', space=vmem, size = 0x1000, scoped, tag = 'input window, operand 0, single buffered']
    #allocation3 [shape = 's32[1]{0}', space=sflag, size = 0x4, scoped, tag = 'scoped memory for mlp_actor_forward.1']
    #allocation4 [shape = 's32[1]{0}', space=sflag, size = 0x4, scoped, tag = 'scoped memory for mlp_actor_forward.1']
    #allocation5 [shape = 'u8[139264]{0}', space=vmem, size = 0x22000, scoped, tag = 'input window, operand 1, single buffered']
    #allocation6 [shape = 's32[1]{0}', space=sflag, size = 0x4, scoped, tag = 'scoped memory for mlp_actor_forward.1']
    #allocation7 [shape = 'u8[4096]{0}', space=vmem, size = 0x1000, scoped, tag = 'output window, operand 0, single buffered']
    %8 = vsyncpa [#allocation3], 0
    %9 = vsyncpa [#allocation6], 0
    %10 = vsyncpa [#allocation4], 0
    // Predicated region
    $region2: #{mlp_actor_forward.1} parent=1 // pred_check
      _
    $region3: #{mlp_actor_forward.1} parent=1 // pred_check_branch
      %12 = sbr.rel (0) target = $region5
    $region4: #{mlp_actor_forward.1} parent=1 // pred_region
      %s14 = ssub.s32 128, 32
      %15 = vsyncadd [#allocation3], %s14
      %s16 = sshll.u32 [#allocation2], 4
      %s17 = int_to_ptr.vmem [resolvable:$true] %s16
      %22 = dma.hbm_to_vmem [thread:$0]  %s0, 32, %s17, [#allocation3], 32, 32, 2
    $region5: #{mlp_actor_forward.1} parent=1 // pred_fallthru
      _
    // Predicated region
    $region6: #{mlp_actor_forward.1} parent=1 // pred_check
      _
    $region7: #{mlp_actor_forward.1} parent=1 // pred_check_branch
      %24 = sbr.rel (0) target = $region9
    $region8: #{mlp_actor_forward.1} parent=1 // pred_region
      %s26 = ssub.s32 4352, 4352
      %27 = vsyncadd [#allocation6], %s26
      %s28 = sshll.u32 [#allocation5], 4
      %s29 = int_to_ptr.vmem [resolvable:$true] %s28
      %34 = dma.hbm_to_vmem [thread:$0]  %s1, 4352, %s29, [#allocation6], 128, 128, 8
    $region9: #{mlp_actor_forward.1} parent=1 // pred_fallthru
      _
    // Predicated region
    $region10: #{mlp_actor_forward.1} parent=1 // pred_check
      _
    $region11: #{mlp_actor_forward.1} parent=1 // pred_check_branch
      %36 = sbr.rel (0) target = $region13
    $region12: #{mlp_actor_forward.1} parent=1 // pred_region
      _
    $region13: #{mlp_actor_forward.1} parent=1 // pred_fallthru
      _
    // Predicated region
    $region14: #{mlp_actor_forward.1} parent=1 // pred_check
      _
    $region15: #{mlp_actor_forward.1} parent=1 // pred_check_branch
      %38 = sbr.rel (0) target = $region17
    $region16: #{mlp_actor_forward.1} parent=1 // pred_region
      %39 = dma.done [#allocation3], 128
    $region17: #{mlp_actor_forward.1} parent=1 // pred_fallthru
      _
    // Predicated region
    $region18: #{mlp_actor_forward.1} parent=1 // pred_check
      _
    $region19: #{mlp_actor_forward.1} parent=1 // pred_check_branch
      %41 = sbr.rel (0) target = $region21
    $region20: #{mlp_actor_forward.1} parent=1 // pred_region
      %42 = dma.done [#allocation6], 4352
    $region21: #{mlp_actor_forward.1} parent=1 // pred_fallthru
      _
    %v43 = vld [vmem:[#allocation2] sm:$0xff]
    %v44 = vld [vmem:[#allocation5] sm:$0xff]
    %v45 = vld [vmem:[#allocation5 + $0x8] sm:$0xff]
    %v46 = vld [vmem:[%s2] sm:$0x1]
    %v47 = vlaneseq
    %v48 = vshrl.u32 %v47, 7
    %v49 = vsub.s32 0, %v48
    %v50 = vrot.slane %v46, %v49
    %vm51 = vcmask 130048
    %v53 = vsel %vm51, %v43, 0
    %55 = vmatprep.subr.mxu0 0.0
    %56 = vmatpush1.msra.mxu0 %v44
    %57 = vmatprep.subr.mxu0 0.0
    %58 = vmatpush1.msra.mxu0 %v45
    %59 = vmatprep.subr.mxu0 0.0
    %60 = vmatpush1.msra.mxu0 0.0
    %61 = vmatprep.subr.mxu0 0.0
    %62 = vmatpush1.msra.mxu0 0.0
    %63 = vmatprep.subr.mxu0 0.0
    %64 = vmatpush1.msra.mxu0 0.0
    %65 = vmatprep.subr.mxu0 0.0
    %66 = vmatpush1.msra.mxu0 0.0
    %67 = vmatprep.subr.mxu0 0.0
    %68 = vmatpush1.msra.mxu0 0.0
    %69 = vmatprep.subr.mxu0 0.0
    %70 = vmatpush1.msra.mxu0 0.0
    %71 = vmatprep.subr.mxu0 0.0
    %72 = vmatpush1.msra.mxu0 0.0
    %73 = vmatprep.subr.mxu0 0.0
    %74 = vmatpush1.msra.mxu0 0.0
    %75 = vmatprep.subr.mxu0 0.0
    %76 = vmatpush1.msra.mxu0 0.0
    %77 = vmatprep.subr.mxu0 0.0
    %78 = vmatpush1.msra.mxu0 0.0
    %79 = vmatprep.subr.mxu0 0.0
    %80 = vmatpush1.msra.mxu0 0.0
    %81 = vmatprep.subr.mxu0 0.0
    %82 = vmatpush1.msra.mxu0 0.0
    %83 = vmatprep.subr.mxu0 0.0
    %84 = vmatpush1.msra.mxu0 0.0
    %85 = vmatprep.subr.mxu0 0.0
    %86 = vmatpush1.msra.mxu0 0.0
    %87 = vmatprep.subr.mxu0 0.0
    %88 = vmatpush1.msra.mxu0 0.0
    %89 = vmatprep.subr.mxu0 0.0
    %90 = vmatpush1.msra.mxu0 0.0
    %91 = vmatprep.subr.mxu0 0.0
    %92 = vmatpush1.msra.mxu0 0.0
    %93 = vmatprep.subr.mxu0 0.0
    %94 = vmatpush1.msra.mxu0 0.0
    %95 = vmatprep.subr.mxu0 0.0
    %96 = vmatpush1.msra.mxu0 0.0
    %97 = vmatprep.subr.mxu0 0.0
    %98 = vmatpush1.msra.mxu0 0.0
    %99 = vmatprep.subr.mxu0 0.0
    %100 = vmatpush1.msra.mxu0 0.0
    %101 = vmatprep.subr.mxu0 0.0
    %102 = vmatpush1.msra.mxu0 0.0
    %103 = vmatprep.subr.mxu0 0.0
    %104 = vmatpush1.msra.mxu0 0.0
    %105 = vmatprep.subr.mxu0 0.0
    %106 = vmatpush1.msra.mxu0 0.0
    %107 = vmatprep.subr.mxu0 0.0
    %108 = vmatpush1.msra.mxu0 0.0
    %109 = vmatprep.subr.mxu0 0.0
    %110 = vmatpush1.msra.mxu0 0.0
    %111 = vmatprep.subr.mxu0 0.0
    %112 = vmatpush1.msra.mxu0 0.0
    %113 = vmatprep.subr.mxu0 0.0
    %114 = vmatpush1.msra.mxu0 0.0
    %115 = vmatprep.subr.mxu0 0.0
    %116 = vmatpush1.msra.mxu0 0.0
    %117 = vmatprep.subr.mxu0 0.0
    %118 = vmatpush1.msra.mxu0 0.0
    %119 = vmatprep.mubr.f32.mxu0 0.0
    %120 = vmatmul.mubr.f32.gmra.mrb[0].mxu0 %v53
    %v121 = vpop.f32.mrb[0].mxu0
    %v122 = vadd.f32 %v50, %v121
    %v123 = vpop.f32.mrb[0].mxu0
    %124 = vdwg.mxu0
    %v125 = vmax.f32 %v122, 0.0
    %v126 = vld [vmem:[#allocation5 + $0x10] sm:$0xff]
    %v127 = vld [vmem:[#allocation5 + $0x18] sm:$0xff]
    %v128 = vld [vmem:[#allocation5 + $0x20] sm:$0xff]
    %v129 = vld [vmem:[#allocation5 + $0x28] sm:$0xff]
    %v130 = vld [vmem:[#allocation5 + $0x30] sm:$0xff]
    %v131 = vld [vmem:[#allocation5 + $0x38] sm:$0xff]
    %v132 = vld [vmem:[#allocation5 + $0x40] sm:$0xff]
    %v133 = vld [vmem:[#allocation5 + $0x48] sm:$0xff]
    %v134 = vld [vmem:[#allocation5 + $0x50] sm:$0xff]
    %v135 = vld [vmem:[#allocation5 + $0x58] sm:$0xff]
    %v136 = vld [vmem:[#allocation5 + $0x60] sm:$0xff]
    %v137 = vld [vmem:[#allocation5 + $0x68] sm:$0xff]
    %v138 = vld [vmem:[#allocation5 + $0x70] sm:$0xff]
    %v139 = vld [vmem:[#allocation5 + $0x78] sm:$0xff]
    %v140 = vld [vmem:[#allocation5 + $0x80] sm:$0xff]
    %v141 = vld [vmem:[#allocation5 + $0x88] sm:$0xff]
    %v142 = vld [vmem:[%s2 + $0x1] sm:$0x1]
    %v143 = vlaneseq
    %v144 = vshrl.u32 %v143, 7
    %v145 = vsub.s32 0, %v144
    %v146 = vrot.slane %v142, %v145
    %147 = vmatprep.subr.mxu0 0.0
    %148 = vmatpush1.msra.mxu0 %v126
    %149 = vmatprep.subr.mxu0 0.0
    %150 = vmatpush1.msra.mxu0 %v127
    %151 = vmatprep.subr.mxu0 0.0
    %152 = vmatpush1.msra.mxu0 %v128
    %153 = vmatprep.subr.mxu0 0.0
    %154 = vmatpush1.msra.mxu0 %v129
    %155 = vmatprep.subr.mxu0 0.0
    %156 = vmatpush1.msra.mxu0 %v130
    %157 = vmatprep.subr.mxu0 0.0
    %158 = vmatpush1.msra.mxu0 %v131
    %159 = vmatprep.subr.mxu0 0.0
    %160 = vmatpush1.msra.mxu0 %v132
    %161 = vmatprep.subr.mxu0 0.0
    %162 = vmatpush1.msra.mxu0 %v133
    %163 = vmatprep.subr.mxu0 0.0
    %164 = vmatpush1.msra.mxu0 %v134
    %165 = vmatprep.subr.mxu0 0.0
    %166 = vmatpush1.msra.mxu0 %v135
    %167 = vmatprep.subr.mxu0 0.0
    %168 = vmatpush1.msra.mxu0 %v136
    %169 = vmatprep.subr.mxu0 0.0
    %170 = vmatpush1.msra.mxu0 %v137
    %171 = vmatprep.subr.mxu0 0.0
    %172 = vmatpush1.msra.mxu0 %v138
    %173 = vmatprep.subr.mxu0 0.0
    %174 = vmatpush1.msra.mxu0 %v139
    %175 = vmatprep.subr.mxu0 0.0
    %176 = vmatpush1.msra.mxu0 %v140
    %177 = vmatprep.subr.mxu0 0.0
    %178 = vmatpush1.msra.mxu0 %v141
    %179 = vmatprep.subr.mxu0 0.0
    %180 = vmatpush1.msra.mxu0 0.0
    %181 = vmatprep.subr.mxu0 0.0
    %182 = vmatpush1.msra.mxu0 0.0
    %183 = vmatprep.subr.mxu0 0.0
    %184 = vmatpush1.msra.mxu0 0.0
    %185 = vmatprep.subr.mxu0 0.0
    %186 = vmatpush1.msra.mxu0 0.0
    %187 = vmatprep.subr.mxu0 0.0
    %188 = vmatpush1.msra.mxu0 0.0
    %189 = vmatprep.subr.mxu0 0.0
    %190 = vmatpush1.msra.mxu0 0.0
    %191 = vmatprep.subr.mxu0 0.0
    %192 = vmatpush1.msra.mxu0 0.0
    %193 = vmatprep.subr.mxu0 0.0
    %194 = vmatpush1.msra.mxu0 0.0
    %195 = vmatprep.subr.mxu0 0.0
    %196 = vmatpush1.msra.mxu0 0.0
    %197 = vmatprep.subr.mxu0 0.0
    %198 = vmatpush1.msra.mxu0 0.0
    %199 = vmatprep.subr.mxu0 0.0
    %200 = vmatpush1.msra.mxu0 0.0
    %201 = vmatprep.subr.mxu0 0.0
    %202 = vmatpush1.msra.mxu0 0.0
    %203 = vmatprep.subr.mxu0 0.0
    %204 = vmatpush1.msra.mxu0 0.0
    %205 = vmatprep.subr.mxu0 0.0
    %206 = vmatpush1.msra.mxu0 0.0
    %207 = vmatprep.subr.mxu0 0.0
    %208 = vmatpush1.msra.mxu0 0.0
    %209 = vmatprep.subr.mxu0 0.0
    %210 = vmatpush1.msra.mxu0 0.0
    %211 = vmatprep.mubr.f32.mxu0 0.0
    %212 = vmatmul.mubr.f32.gmra.mrb[0].mxu0 %v125
    %v213 = vpop.f32.mrb[0].mxu0
    %v214 = vadd.f32 %v146, %v213
    %v215 = vpop.f32.mrb[0].mxu0
    %216 = vdwg.mxu0
    %v217 = vmax.f32 %v214, 0.0
    %v218 = vld [vmem:[#allocation5 + $0x90] sm:$0xff]
    %v219 = vld [vmem:[#allocation5 + $0x98] sm:$0xff]
    %v220 = vld [vmem:[#allocation5 + $0xa0] sm:$0xff]
    %v221 = vld [vmem:[#allocation5 + $0xa8] sm:$0xff]
    %v222 = vld [vmem:[#allocation5 + $0xb0] sm:$0xff]
    %v223 = vld [vmem:[#allocation5 + $0xb8] sm:$0xff]
    %v224 = vld [vmem:[#allocation5 + $0xc0] sm:$0xff]
    %v225 = vld [vmem:[#allocation5 + $0xc8] sm:$0xff]
    %v226 = vld [vmem:[#allocation5 + $0xd0] sm:$0xff]
    %v227 = vld [vmem:[#allocation5 + $0xd8] sm:$0xff]
    %v228 = vld [vmem:[#allocation5 + $0xe0] sm:$0xff]
    %v229 = vld [vmem:[#allocation5 + $0xe8] sm:$0xff]
    %v230 = vld [vmem:[#allocation5 + $0xf0] sm:$0xff]
    %v231 = vld [vmem:[#allocation5 + $0xf8] sm:$0xff]
    %v232 = vld [vmem:[#allocation5 + $0x100] sm:$0xff]
    %v233 = vld [vmem:[#allocation5 + $0x108] sm:$0xff]
    %v234 = vld [vmem:[%s2 + $0x2] sm:$0x1]
    %v235 = vlaneseq
    %v236 = vshrl.u32 %v235, 7
    %v237 = vsub.s32 0, %v236
    %v238 = vrot.slane %v234, %v237
    %239 = vmatprep.subr.mxu0 0.0
    %240 = vmatpush1.msra.mxu0 %v218
    %241 = vmatprep.subr.mxu0 0.0
    %242 = vmatpush1.msra.mxu0 %v219
    %243 = vmatprep.subr.mxu0 0.0
    %244 = vmatpush1.msra.mxu0 %v220
    %245 = vmatprep.subr.mxu0 0.0
    %246 = vmatpush1.msra.mxu0 %v221
    %247 = vmatprep.subr.mxu0 0.0
    %248 = vmatpush1.msra.mxu0 %v222
    %249 = vmatprep.subr.mxu0 0.0
    %250 = vmatpush1.msra.mxu0 %v223
    %251 = vmatprep.subr.mxu0 0.0
    %252 = vmatpush1.msra.mxu0 %v224
    %253 = vmatprep.subr.mxu0 0.0
    %254 = vmatpush1.msra.mxu0 %v225
    %255 = vmatprep.subr.mxu0 0.0
    %256 = vmatpush1.msra.mxu0 %v226
    %257 = vmatprep.subr.mxu0 0.0
    %258 = vmatpush1.msra.mxu0 %v227
    %259 = vmatprep.subr.mxu0 0.0
    %260 = vmatpush1.msra.mxu0 %v228
    %261 = vmatprep.subr.mxu0 0.0
    %262 = vmatpush1.msra.mxu0 %v229
    %263 = vmatprep.subr.mxu0 0.0
    %264 = vmatpush1.msra.mxu0 %v230
    %265 = vmatprep.subr.mxu0 0.0
    %266 = vmatpush1.msra.mxu0 %v231
    %267 = vmatprep.subr.mxu0 0.0
    %268 = vmatpush1.msra.mxu0 %v232
    %269 = vmatprep.subr.mxu0 0.0
    %270 = vmatpush1.msra.mxu0 %v233
    %271 = vmatprep.subr.mxu0 0.0
    %272 = vmatpush1.msra.mxu0 0.0
    %273 = vmatprep.subr.mxu0 0.0
    %274 = vmatpush1.msra.mxu0 0.0
    %275 = vmatprep.subr.mxu0 0.0
    %276 = vmatpush1.msra.mxu0 0.0
    %277 = vmatprep.subr.mxu0 0.0
    %278 = vmatpush1.msra.mxu0 0.0
    %279 = vmatprep.subr.mxu0 0.0
    %280 = vmatpush1.msra.mxu0 0.0
    %281 = vmatprep.subr.mxu0 0.0
    %282 = vmatpush1.msra.mxu0 0.0
    %283 = vmatprep.subr.mxu0 0.0
    %284 = vmatpush1.msra.mxu0 0.0
    %285 = vmatprep.subr.mxu0 0.0
    %286 = vmatpush1.msra.mxu0 0.0
    %287 = vmatprep.subr.mxu0 0.0
    %288 = vmatpush1.msra.mxu0 0.0
    %289 = vmatprep.subr.mxu0 0.0
    %290 = vmatpush1.msra.mxu0 0.0
    %291 = vmatprep.subr.mxu0 0.0
    %292 = vmatpush1.msra.mxu0 0.0
    %293 = vmatprep.subr.mxu0 0.0
    %294 = vmatpush1.msra.mxu0 0.0
    %295 = vmatprep.subr.mxu0 0.0
    %296 = vmatpush1.msra.mxu0 0.0
    %297 = vmatprep.subr.mxu0 0.0
    %298 = vmatpush1.msra.mxu0 0.0
    %299 = vmatprep.subr.mxu0 0.0
    %300 = vmatpush1.msra.mxu0 0.0
    %301 = vmatprep.subr.mxu0 0.0
    %302 = vmatpush1.msra.mxu0 0.0
    %303 = vmatprep.mubr.f32.mxu0 0.0
    %304 = vmatmul.mubr.f32.gmra.mrb[0].mxu0 %v217
    %v305 = vpop.f32.mrb[0].mxu0
    %v306 = vadd.f32 %v238, %v305
    %v307 = vpop.f32.mrb[0].mxu0
    %308 = vdwg.mxu0
    %v309 = vtanh.pop %v306
    %v310 = vmul.f32 %v309, 2.0
    %vm311 = vcmask 64512
    %312 = vst.msk [vmem:[#allocation7] sm:$0xff] %vm311, %v310
    // Predicated region
    $region22: #{mlp_actor_forward.1} parent=1 // pred_check
      _
    $region23: #{mlp_actor_forward.1} parent=1 // pred_check_branch
      %314 = sbr.rel (0) target = $region25
    $region24: #{mlp_actor_forward.1} parent=1 // pred_region
      %s316 = ssub.s32 128, 32
      %317 = vsyncadd [#allocation4], %s316
      %s318 = sshll.u32 [#allocation7], 4
      %s319 = int_to_ptr.vmem [resolvable:$true] %s318
      %324 = dma.vmem_to_hbm [thread:$0]  %s319, 32, %s3, [#allocation4], 32, 32, 2
    $region25: #{mlp_actor_forward.1} parent=1 // pred_fallthru
      _
    // Predicated region
    $region26: #{mlp_actor_forward.1} parent=1 // pred_check
      _
    $region27: #{mlp_actor_forward.1} parent=1 // pred_check_branch
      %326 = sbr.rel (0) target = $region29
    $region28: #{mlp_actor_forward.1} parent=1 // pred_region
      %327 = dma.done [#allocation4], 128
    $region29: #{mlp_actor_forward.1} parent=1 // pred_fallthru
      _
    %328 = vsyncpa [#allocation3], 1
    %329 = vsyncpa [#allocation6], 1
    %330 = vsyncpa [#allocation4], 1

</llo_original>
